<compile_context>
chip_gen: v7x
topology: tpu7x:2x2x1
jax: 0.10.0
libtpu: 0.0.40
codegen_flags: <defaults>
</compile_context>

<pallas_src>
import jax
import jax.numpy as jnp
from jax.experimental import pallas as pl
from jax.experimental.pallas import tpu as pltpu


_LANE = 128
_SUBLANE = 8
_MAX_ROW_TILE = 2048


def _round_up(x, m):
    return ((x + m - 1) // m) * m


def _vmem_budgets():
    """Returns (tile_budget_bytes, scoped_vmem_limit_bytes, multi_tensorcore)."""
    vmem = 64 << 20                      # conservative default == v7x per-TC VMEM
    try:
        info = pltpu.get_tpu_info()
        v = getattr(info, "vmem_capacity_bytes", None)
        if v:
            vmem = int(v)
    except Exception:
        pass
    if vmem >= (100 << 20):              # v5e / v6e: 128 MiB physical, single TC
        return 64 << 20, 100 << 20, False
    # v7x-like: 64 MiB per TC, 2 TensorCores per chip
    return 28 << 20, 56 << 20, True


def _even_grid_tile(M, tm, multi_tc):
    """On multi-TC chips, shrink tm (multiple of 8) so the row grid has an even
    number of >= 2 steps; leave single-TC chips alone (serial grid)."""
    if not multi_tc or M <= _SUBLANE:
        return tm
    steps = pl.cdiv(M, tm)
    if steps >= 2 and steps % 2 == 0:
        return tm
    target = max(2, steps + (steps % 2))
    tm2 = _round_up(pl.cdiv(M, target), _SUBLANE)
    if tm2 >= _SUBLANE and pl.cdiv(M, tm2) % 2 == 0:
        return tm2
    return tm


def _sigmoid_f32(x_ref):
    # EUP exp + EUP approximate reciprocal (keeps the VALU free for the bias add).
    xf = x_ref[...].astype(jnp.float32)
    return pl.reciprocal(1.0 + jnp.exp(-xf), approx=True)


def _fc_sigmoid_kernel(x_ref, w_ref, b_ref, o_ref):
    # Resident-weight fast path: one row tile per grid step.
    h = _sigmoid_f32(x_ref).astype(w_ref.dtype)                     # [tm, H] bf16
    out = jnp.dot(h, w_ref[...], preferred_element_type=jnp.float32)  # [tm, S]
    o_ref[...] = (out + b_ref[...]).astype(o_ref.dtype)


def _fc_sigmoid_ktiled_kernel(x_ref, w_ref, b_ref, o_ref, acc_ref):
    # Fallback: contraction (K) axis tiled, f32 accumulator scratch.
    k = pl.program_id(1)

    @pl.when(k == 0)
    def _():
        acc_ref[...] = jnp.zeros_like(acc_ref)

    h = _sigmoid_f32(x_ref).astype(w_ref.dtype)                     # [tm, tk]
    acc_ref[...] += jnp.dot(h, w_ref[...], preferred_element_type=jnp.float32)

    @pl.when(k == pl.num_programs(1) - 1)
    def _():
        o_ref[...] = (acc_ref[...] + b_ref[...]).astype(o_ref.dtype)


class SpeakerClassifierPallas:
    """JAX/Pallas port of SpeakerClassifier.forward: fc(sigmoid(x)).

    weight: [n_speaker, hidden] (PyTorch nn.Linear layout), bias: [n_speaker].
    Weight/bias prep (transpose, pad, bf16 cast) is done once here.
    """

    def __init__(self, weight, bias, matmul_dtype=jnp.bfloat16):
        S, H = weight.shape
        self.S, self.H = S, H

        # Pad the speaker axis only when it is cheap (>=128 lanes and <=25%
        # inflation); tiny S keeps masked stores but 8x fewer write bytes.
        S_pad = S
        if S >= _LANE and S % _LANE != 0:
            cand = _round_up(S, _LANE)
            if 4 * cand <= 5 * S:
                S_pad = cand
        self.S_pad = S_pad

        wT = jnp.asarray(weight).T.astype(matmul_dtype)             # [H, S]
        b = jnp.asarray(bias).astype(jnp.float32)
        if S_pad != S:
            wT = jnp.pad(wT, ((0, 0), (0, S_pad - S)))
            b = jnp.pad(b, (0, S_pad - S))
        self.b2d = b.reshape(1, S_pad)

        self.tile_budget, self.vmem_limit, self.multi_tc = _vmem_budgets()

        w_item = jnp.dtype(matmul_dtype).itemsize
        weight_bytes = H * S_pad * w_item + S_pad * 4                # single-buffered
        per_row_worst = 2 * H * 4 + 2 * S_pad * 4                    # f32 worst case
        self.resident = weight_bytes + _SUBLANE * per_row_worst <= self.tile_budget

        if self.resident:
            self.wT = wT                                             # [H, S_pad]
            self.H_pad, self.tk = H, H
        else:
            # Zero-pad the contraction axis so partial K blocks never read
            # undefined VMEM (zero weight rows kill the sigmoid(pad) term).
            tk = min(512, _round_up(H, _SUBLANE))
            H_pad = _round_up(H, tk)
            if H_pad != H:
                wT = jnp.pad(wT, ((0, H_pad - H), (0, 0)))
            self.wT = wT                                             # [H_pad, S_pad]
            self.H_pad, self.tk = H_pad, tk

    def __call__(self, x):
        *lead, H = x.shape
        assert H == self.H, f"expected hidden={self.H}, got {H}"
        x2d = x.reshape(-1, H)
        M = x2d.shape[0]
        out_dtype = x.dtype
        x_item = jnp.dtype(x.dtype).itemsize
        out_item = jnp.dtype(out_dtype).itemsize
        S_pad = self.S_pad
        w_item = jnp.dtype(self.wT.dtype).itemsize

        if self.resident:
            weight_bytes = self.H * S_pad * w_item + S_pad * 4
            per_row = 2 * self.H * x_item + 2 * S_pad * out_item
            tm = (self.tile_budget - weight_bytes) // per_row
            tm = max(_SUBLANE, (tm // _SUBLANE) * _SUBLANE)
            tm = min(tm, _MAX_ROW_TILE, _round_up(M, _SUBLANE))
            tm = _even_grid_tile(M, tm, self.multi_tc)
            grid = (pl.cdiv(M, tm),)

            out = pl.pallas_call(
                _fc_sigmoid_kernel,
                out_shape=jax.ShapeDtypeStruct((M, S_pad), out_dtype),
                grid_spec=pltpu.PrefetchScalarGridSpec(
                    num_scalar_prefetch=0,
                    grid=grid,
                    in_specs=[
                        pl.BlockSpec((tm, self.H), lambda i: (i, 0)),
                        pl.BlockSpec((self.H, S_pad), lambda i: (0, 0),
                                     pipeline_mode=pl.Buffered(1)),
                        pl.BlockSpec((1, S_pad), lambda i: (0, 0),
                                     pipeline_mode=pl.Buffered(1)),
                    ],
                    out_specs=pl.BlockSpec((tm, S_pad), lambda i: (i, 0)),
                ),
                compiler_params=pltpu.CompilerParams(
                    dimension_semantics=("parallel",),
                    vmem_limit_bytes=self.vmem_limit,
                ),
            )(x2d, self.wT, self.b2d)
        else:
            tk, H_pad = self.tk, self.H_pad
            if H_pad != H:
                x2d = jnp.pad(x2d, ((0, 0), (0, H_pad - H)))
            fixed = 2 * tk * S_pad * w_item + S_pad * 4              # dbuf W tile + bias
            per_row = 2 * tk * x_item + 2 * S_pad * out_item + S_pad * 4
            avail = self.tile_budget - fixed
            tm = (avail // per_row // _SUBLANE) * _SUBLANE if avail > 0 else _SUBLANE
            tm = max(_SUBLANE, tm)
            # TODO(synk): if S_pad is so large that even tm=8 overflows VMEM,
            # additionally tile the speaker axis (needs per-S-block bias slices).
            tm = min(tm, _MAX_ROW_TILE, _round_up(M, _SUBLANE))
            tm = _even_grid_tile(M, tm, self.multi_tc)
            grid = (pl.cdiv(M, tm), H_pad // tk)

            out = pl.pallas_call(
                _fc_sigmoid_ktiled_kernel,
                out_shape=jax.ShapeDtypeStruct((M, S_pad), out_dtype),
                grid_spec=pltpu.PrefetchScalarGridSpec(
                    num_scalar_prefetch=0,
                    grid=grid,
                    in_specs=[
                        pl.BlockSpec((tm, tk), lambda i, k: (i, k)),
                        pl.BlockSpec((tk, S_pad), lambda i, k: (k, 0)),
                        pl.BlockSpec((1, S_pad), lambda i, k: (0, 0),
                                     pipeline_mode=pl.Buffered(1)),
                    ],
                    out_specs=pl.BlockSpec((tm, S_pad), lambda i, k: (i, 0)),
                    scratch_shapes=[pltpu.VMEM((tm, S_pad), jnp.float32)],
                ),
                compiler_params=pltpu.CompilerParams(
                    dimension_semantics=("parallel", "arbitrary"),
                    vmem_limit_bytes=self.vmem_limit,
                ),
            )(x2d, self.wT, self.b2d)

        if S_pad != self.S:
            out = out[:, : self.S]
        return out.reshape(*lead, self.S)


if __name__ == "__main__":
    # hidden_size = 32, n_speaker = 16, x: [B=2, T=8, H=32]
    B, T, H, S = 2, 8, 32, 16

    key = jax.random.PRNGKey(0)
    kx, kw, kb = jax.random.split(key, 3)

    x = jax.random.normal(kx, (B, T, H), dtype=jnp.float32)
    # nn.Linear default init: U(-1/sqrt(H), 1/sqrt(H)) for weight and bias.
    bound = 1.0 / (H ** 0.5)
    weight = jax.random.uniform(kw, (S, H), minval=-bound, maxval=bound,
                                dtype=jnp.float32)
    bias = jax.random.uniform(kb, (S,), minval=-bound, maxval=bound,
                              dtype=jnp.float32)

    mod = SpeakerClassifierPallas(weight, bias)
    out = jax.block_until_ready(mod(x))

    # Plain-JAX reference (same math as the PyTorch forward).
    ref = jax.nn.sigmoid(x) @ weight.T + bias
    assert out.shape == (B, T, S)
    # bf16 MXU operands + approximate EUP reciprocal -> relaxed tolerance.
    assert jnp.allclose(out, ref, atol=3e-2, rtol=3e-2)

    print("KERNEL_OK")
</pallas_src>

<mosaic_0001>
module attributes {stable_mosaic.version = 11 : i64} {
  func.func @_fc_sigmoid_kernel(%arg0: i32, %arg1: memref<8x32xf32, #tpu.memory_space<vmem>>, %arg2: memref<32x16xbf16, #tpu.memory_space<vmem>>, %arg3: memref<1x16xf32, #tpu.memory_space<vmem>>, %arg4: memref<8x16xf32, #tpu.memory_space<vmem>>) attributes {dimension_semantics = [#tpu.dimension_semantics<parallel>], iteration_bounds = array<i64: 2>, scalar_prefetch = 0 : i64, scratch_operands = 0 : i64, tpu.core_type = #tpu.core_type<tc>, window_params = [{transform_indices = @transform_0, window_bounds = array<i64: 8, 32>}, {pipeline_mode = #tpu.pipeline_mode<synchronous>, transform_indices = @transform_1, window_bounds = array<i64: 32, 16>}, {pipeline_mode = #tpu.pipeline_mode<synchronous>, transform_indices = @transform_2, window_bounds = array<i64: 1, 16>}, {transform_indices = @transform_3, window_bounds = array<i64: 8, 16>}]} {
    %c0 = arith.constant 0 : index
    %c0_0 = arith.constant 0 : index
    %0 = vector.load %arg1[%c0, %c0_0] : memref<8x32xf32, #tpu.memory_space<vmem>>, vector<8x32xf32>
    %cst = arith.constant 0.000000e+00 : f32
    %1 = vector.broadcast %cst : f32 to vector<8x32xf32>
    %2 = arith.subf %1, %0 : vector<8x32xf32>
    %3 = math.exp %2 : vector<8x32xf32>
    %cst_1 = arith.constant 1.000000e+00 : f32
    %4 = vector.broadcast %cst_1 : f32 to vector<8x32xf32>
    %5 = arith.addf %4, %3 : vector<8x32xf32>
    %6 = tpu.reciprocal %5 {approx = true} : vector<8x32xf32> -> vector<8x32xf32>
    %7 = arith.truncf %6 : vector<8x32xf32> to vector<8x32xbf16>
    %c0_2 = arith.constant 0 : index
    %c0_3 = arith.constant 0 : index
    %8 = vector.load %arg2[%c0_2, %c0_3] : memref<32x16xbf16, #tpu.memory_space<vmem>>, vector<32x16xbf16>
    %cst_4 = arith.constant dense<0.000000e+00> : vector<8x16xf32>
    %9 = tpu.matmul %7, %8, %cst_4 {dimension_numbers = #tpu.dot_dimension_numbers<[1], [0], [0], [1], [0, 0, 1, 1], [], []>} : vector<8x32xbf16>, vector<32x16xbf16>, vector<8x16xf32> -> vector<8x16xf32>
    %c0_5 = arith.constant 0 : index
    %c0_6 = arith.constant 0 : index
    %10 = vector.load %arg3[%c0_5, %c0_6] : memref<1x16xf32, #tpu.memory_space<vmem>>, vector<1x16xf32>
    %11 = vector.broadcast %10 : vector<1x16xf32> to vector<8x16xf32>
    %12 = arith.addf %9, %11 : vector<8x16xf32>
    %c0_7 = arith.constant 0 : index
    %c0_8 = arith.constant 0 : index
    %13 = vector.load %arg4[%c0_7, %c0_8] : memref<8x16xf32, #tpu.memory_space<vmem>>, vector<8x16xf32>
    tpu.vector_store %arg4[%c0_7, %c0_8], %12 {strides = array<i32>} : memref<8x16xf32, #tpu.memory_space<vmem>>, vector<8x16xf32>,
    return
  }
  func.func @transform_0(%arg0: i32) -> (i32, i32) {
    %c0_i32 = arith.constant 0 : i32
    %c0_i32_0 = arith.constant 0 : i32
    return %arg0, %c0_i32 : i32, i32
  }
  func.func @transform_1(%arg0: i32) -> (i32, i32) {
    %c0_i32 = arith.constant 0 : i32
    %c0_i32_0 = arith.constant 0 : i32
    %c0_i32_1 = arith.constant 0 : i32
    return %c0_i32, %c0_i32_0 : i32, i32
  }
  func.func @transform_2(%arg0: i32) -> (i32, i32) {
    %c0_i32 = arith.constant 0 : i32
    %c0_i32_0 = arith.constant 0 : i32
    %c0_i32_1 = arith.constant 0 : i32
    return %c0_i32, %c0_i32_0 : i32, i32
  }
  func.func @transform_3(%arg0: i32) -> (i32, i32) {
    %c0_i32 = arith.constant 0 : i32
    %c0_i32_0 = arith.constant 0 : i32
    return %arg0, %c0_i32 : i32, i32
  }
}

</mosaic_0001>

<llo_original>
// kernel: tpu_custom_call.1
$region0: #{tpu_custom_call.1}
  #allocation0 [shape = 'u32[]', space=smem, size = 0x4, offset = 0x4, fixed_abs, tag = 'smem constant byte address 0x4 - core index']
  #allocation1 [shape = 'u32[144,128]{1,0:T(1,128)}', space=vmem, size = 0x12000, scoped, tag = 'internal scratch']
  %s0 = inlined_call_operand.vmem [shape: f32[16,32], index: 0, kind: input, shape index: {}]
  %s1 = inlined_call_operand.vmem [shape: bf16[32,16], index: 1, kind: input, shape index: {}]
  %s2 = inlined_call_operand.vmem [shape: f32[1,16], index: 2, kind: input, shape index: {}]
  %s3 = inlined_call_operand.hbm [shape: f32[16,16], index: 3, kind: output, shape index: {}]
  %s4 = sld [smem:[#allocation0]]
  $region45: #{tpu_custom_call.1} parent=0
    _
  %s6 = ssub.s32 1, %s4
  %s7 = scalar_select 0, %s6, %s4
  $region1: #{tpu_custom_call.1} parent=0
    #allocation2 [shape = 'u8[8192]{0}', space=vmem, size = 0x2000, scoped, tag = 'output window, operand 0']
    #allocation3 [shape = 's32[2]{0}', space=sflag, size = 0x8, scoped, tag = 'scoped memory for tpu_custom_call.1']
    %8 = vsyncpa [#allocation3], 0
    %s9 = scalar_lea.sflag [#allocation3], 1
    %10 = vsyncpa %s9, 0
    loop: start=0, step=1, limit=4
    $region2: #{tpu_custom_call.1} parent=1 // loop_pre_header
      _
    $region3: #{tpu_custom_call.1} parent=1 // loop_header
      %s12 = sphi 0, %s16
      %p13 = scmp.ge.s32.totalorder %s12, 4
      %s22 = sphi 0, %s24
      %s25 = sphi 0, %s22
      %s26 = sphi 0, %s25
      %s42 = sphi 0, %s26
      %s46 = sphi 0, %s46
      %s48 = sphi 0, %s46
      %s49 = sphi 0, %s48
      %s63 = sphi 0, %s49
      %s67 = sphi 0, %s67
      %s69 = sphi 0, %s67
      %s70 = sphi 0, %s69
      %s84 = sphi 0, %s70
      %s90 = sphi 0, %s92
      %s93 = sphi 0, %s90
      %s94 = sphi 0, %s93
      %s110 = sphi 0, %s94
    $region4: #{tpu_custom_call.1} parent=1 // loop_header_branch
      %15 = sbr.rel (%p13) target = $region8
    $region5: #{tpu_custom_call.1} parent=1 // loop_body
      %s17 = ssub.s32 %s12, 1
      %s18 = ssub.s32 %s12, 2
      %s19 = sadd.s32 %s12, 1
      %s20 = ssub.s32 %s12, %s19
      %p21 = scmp.eq.s32.totalorder %s20, 0
      %s23 = sadd.s32 %s22, 1
      %s24 = scalar_select %p21, %s22, %s23
      %p27 = pneg %p21
      %p28 = scmp.eq.s32.totalorder %s12, 1
      %p29 = por %p27, %p28
      %p30 = scmp.ne.s32.totalorder %s22, %s25
      %p31 = scmp.eq.s32.totalorder %s12, 0
      %p32 = por %p30, %p31
      %p33 = scmp.ne.s32.totalorder %s22, %s25
      %p34 = scmp.eq.s32.totalorder %s17, 1
      %p35 = por %p33, %p34
      %p36 = scmp.ne.s32.totalorder %s25, %s26
      %p37 = scmp.eq.s32.totalorder %s17, 0
      %p38 = por %p36, %p37
      %p39 = scmp.ne.s32.totalorder %s25, %s26
      %p40 = scmp.eq.s32.totalorder %s18, 1
      %p41 = por %p39, %p40
      %p43 = scmp.ne.s32.totalorder %s26, %s42
      %p44 = scmp.eq.s32.totalorder %s18, 0
      %p45 = por %p43, %p44
      %s47 = sadd.s32 %s46, 1
      %p50 = scmp.eq.s32.totalorder %s12, 1
      %p51 = scmp.ne.s32.totalorder %s46, %s48
      %p52 = scmp.eq.s32.totalorder %s12, 0
      %p53 = por %p51, %p52
      %p54 = scmp.ne.s32.totalorder %s46, %s48
      %p55 = scmp.eq.s32.totalorder %s17, 1
      %p56 = por %p54, %p55
      %p57 = scmp.ne.s32.totalorder %s48, %s49
      %p58 = scmp.eq.s32.totalorder %s17, 0
      %p59 = por %p57, %p58
      %p60 = scmp.ne.s32.totalorder %s48, %s49
      %p61 = scmp.eq.s32.totalorder %s18, 1
      %p62 = por %p60, %p61
      %p64 = scmp.ne.s32.totalorder %s49, %s63
      %p65 = scmp.eq.s32.totalorder %s18, 0
      %p66 = por %p64, %p65
      %s68 = sadd.s32 %s67, 1
      %p71 = scmp.eq.s32.totalorder %s12, 1
      %p72 = scmp.ne.s32.totalorder %s67, %s69
      %p73 = scmp.eq.s32.totalorder %s12, 0
      %p74 = por %p72, %p73
      %p75 = scmp.ne.s32.totalorder %s67, %s69
      %p76 = scmp.eq.s32.totalorder %s17, 1
      %p77 = por %p75, %p76
      %p78 = scmp.ne.s32.totalorder %s69, %s70
      %p79 = scmp.eq.s32.totalorder %s17, 0
      %p80 = por %p78, %p79
      %p81 = scmp.ne.s32.totalorder %s69, %s70
      %p82 = scmp.eq.s32.totalorder %s18, 1
      %p83 = por %p81, %p82
      %p85 = scmp.ne.s32.totalorder %s70, %s84
      %p86 = scmp.eq.s32.totalorder %s18, 0
      %p87 = por %p85, %p86
      %s88 = ssub.s32 %s12, %s19
      %p89 = scmp.eq.s32.totalorder %s88, 0
      %s91 = sadd.s32 %s90, 1
      %s92 = scalar_select %p89, %s90, %s91
      %p95 = pneg %p89
      %p96 = scmp.eq.s32.totalorder %s12, 1
      %p97 = por %p95, %p96
      %p98 = scmp.ne.s32.totalorder %s90, %s93
      %p99 = scmp.eq.s32.totalorder %s12, 0
      %p100 = por %p98, %p99
      %p101 = scmp.ne.s32.totalorder %s90, %s93
      %p102 = scmp.eq.s32.totalorder %s17, 1
      %p103 = por %p101, %p102
      %p104 = scmp.ne.s32.totalorder %s93, %s94
      %p105 = scmp.eq.s32.totalorder %s17, 0
      %p106 = por %p104, %p105
      %p107 = scmp.ne.s32.totalorder %s93, %s94
      %p108 = scmp.eq.s32.totalorder %s18, 1
      %p109 = por %p107, %p108
      %p111 = scmp.ne.s32.totalorder %s94, %s110
      %p112 = scmp.eq.s32.totalorder %s18, 0
      %p113 = por %p111, %p112
      %p114 = scmp.le.s32.totalorder 1, %s12
      %p115 = scmp.lt.s32.totalorder %s12, 3
      %p116 = pnand %p114, %p115
      %p117 = pneg %p116
      // Predicated region
      $region9: #{tpu_custom_call.1} parent=5 // pred_check
        _
      $region10: #{tpu_custom_call.1} parent=5 // pred_check_branch
        %119 = sbr.rel (%p116) target = $region12
      $region11: #{tpu_custom_call.1} parent=5 // pred_region
        %s120 = ssub.s32 %s12, 1
        // Predicated region
        $region13: #{tpu_custom_call.1} parent=11 // pred_check
          %p121 = pneg %p59
        $region14: #{tpu_custom_call.1} parent=11 // pred_check_branch
          %123 = sbr.rel (%p121) target = $region16
        $region15: #{tpu_custom_call.1} parent=11 // pred_region
          _
        $region16: #{tpu_custom_call.1} parent=11 // pred_fallthru
          _
        // Predicated region
        $region17: #{tpu_custom_call.1} parent=11 // pred_check
          %p124 = pneg %p80
        $region18: #{tpu_custom_call.1} parent=11 // pred_check_branch
          %126 = sbr.rel (%p124) target = $region20
        $region19: #{tpu_custom_call.1} parent=11 // pred_region
          _
        $region20: #{tpu_custom_call.1} parent=11 // pred_fallthru
          _
      $region12: #{tpu_custom_call.1} parent=5 // pred_fallthru
        _
      %p127 = scmp.lt.s32.totalorder %s12, 2
      // Predicated region
      $region21: #{tpu_custom_call.1} parent=5 // pred_check
        %p128 = pneg %p127
      $region22: #{tpu_custom_call.1} parent=5 // pred_check_branch
        %130 = sbr.rel (%p128) target = $region24
      $region23: #{tpu_custom_call.1} parent=5 // pred_region
        // Predicated region
        $region25: #{tpu_custom_call.1} parent=23 // pred_check
          %p131 = pneg %p32
        $region26: #{tpu_custom_call.1} parent=23 // pred_check_branch
          %133 = sbr.rel (%p131) target = $region28
        $region27: #{tpu_custom_call.1} parent=23 // pred_region
          %p134 = scmp.lt.s32.totalorder %s12, 1
          %s135 = scalar_select %p134, %s12, 1
          %s136 = smul.addr %s135, 8
          %s137 = scalar_lea.vmem %s0, %s136
        $region28: #{tpu_custom_call.1} parent=23 // pred_fallthru
          _
      $region24: #{tpu_custom_call.1} parent=5 // pred_fallthru
        _
      %p138 = scmp.le.s32.totalorder 1, %s12
      %p139 = scmp.lt.s32.totalorder %s12, 3
      %p140 = pnand %p138, %p139
      %p141 = pneg %p140
      // Predicated region
      $region29: #{tpu_custom_call.1} parent=5 // pred_check
        _
      $region30: #{tpu_custom_call.1} parent=5 // pred_check_branch
        %143 = sbr.rel (%p140) target = $region32
      $region31: #{tpu_custom_call.1} parent=5 // pred_region
        %s144 = ssub.s32 %s12, 1
        %p145 = scmp.lt.s32.totalorder %s17, 1
        %s146 = scalar_select %p145, %s17, 1
        %s147 = smul.addr %s146, 8
        %s148 = scalar_lea.vmem %s0, %s147
        %p149 = pneg %p38
        %p150 = pneg %p35
        %p151 = pneg %p59
        %p152 = pneg %p56
        %p153 = pneg %p80
        %p154 = pneg %p77
        %p155 = pneg %p106
        %p156 = pneg %p103
        %s157 = sand.u32 %s93, 1
        %s158 = scalar_lea.sflag [#allocation3], %s157
        %s159 = sand.u32 %s93, 1
        %s160 = smul.addr %s159, 8
        %s161 = scalar_lea.vmem [#allocation2], %s160
        %p162 = scmp.lt.s32.totalorder %s17, 1
        %s163 = scalar_select %p162, %s17, 1
        %s164 = smul.addr %s163, 8
        %s165 = scalar_lea.vmem %s0, %s164
        %v167 = vld [vmem:[%s165] sm:$0xff]
        %v168 = vsub.f32 0.0, %v167
        %v169 = vmul.f32 %v168, 1.442695
        %v170 = vpow.pop %v169
        %v171 = vadd.f32 %v170, 1.0
        %v172 = vrcp.pop %v171
        %v173 = vpack.c.bf16 %v172, %v172
        %v174 = vld [vmem:[%s1] sm:$0xf]
        %v175 = vld [vmem:[%s1 + $0x4] sm:$0xf]
        %v176 = vld [vmem:[%s1 + $0x8] sm:$0xf]
        %v177 = vld [vmem:[%s1 + $0xc] sm:$0xf]
        %v178 = vld [vmem:[%s2] sm:$0x1]
        %v180 = vlaneseq
        %v181 = vshrl.u32 %v180, 7
        %v182 = vsub.s32 0, %v181
        %v183 = vrot.slane %v178, %v182
        %v189 = vunpack.c.l.b16 %v174
        %v190 = vunpack.c.l.b16 %v175
        %v191 = vunpack.c.l.b16 %v176
        %v192 = vunpack.c.l.b16 %v177
        %v193 = vpack.c.b16 %v190, %v189
        %v194 = vpack.c.b16 %v192, %v191
        %vm197 = vcmask 261120
        %v199 = vsel %vm197, %v173, 0
        %201 = vmatprep.subr.bf16.mxu0 0
        %202 = vmatpush1.bf16.msra.mxu0 %v193
        %203 = vmatprep.subr.bf16.mxu0 0
        %204 = vmatpush1.bf16.msra.mxu0 %v194
        %205 = vmatprep.subr.bf16.mxu0 0
        %206 = vmatpush1.bf16.msra.mxu0 0
        %207 = vmatprep.subr.bf16.mxu0 0
        %208 = vmatpush1.bf16.msra.mxu0 0
        %209 = vmatprep.subr.bf16.mxu0 0
        %210 = vmatpush1.bf16.msra.mxu0 0
        %211 = vmatprep.subr.bf16.mxu0 0
        %212 = vmatpush1.bf16.msra.mxu0 0
        %213 = vmatprep.subr.bf16.mxu0 0
        %214 = vmatpush1.bf16.msra.mxu0 0
        %215 = vmatprep.subr.bf16.mxu0 0
        %216 = vmatpush1.bf16.msra.mxu0 0
        %217 = vmatprep.subr.bf16.mxu0 0
        %218 = vmatpush1.bf16.msra.mxu0 0
        %219 = vmatprep.subr.bf16.mxu0 0
        %220 = vmatpush1.bf16.msra.mxu0 0
        %221 = vmatprep.subr.bf16.mxu0 0
        %222 = vmatpush1.bf16.msra.mxu0 0
        %223 = vmatprep.subr.bf16.mxu0 0
        %224 = vmatpush1.bf16.msra.mxu0 0
        %225 = vmatprep.subr.bf16.mxu0 0
        %226 = vmatpush1.bf16.msra.mxu0 0
        %227 = vmatprep.subr.bf16.mxu0 0
        %228 = vmatpush1.bf16.msra.mxu0 0
        %229 = vmatprep.subr.bf16.mxu0 0
        %230 = vmatpush1.bf16.msra.mxu0 0
        %231 = vmatprep.subr.bf16.mxu0 0
        %232 = vmatpush1.bf16.msra.mxu0 0
        %233 = vmatprep.mubr.bf16.mxu0 0
        %234 = vmatmul.mubr.bf16.gmra.mrb[0].mxu0 %v199
        %v235 = vpop.f32.mrb[0].mxu0
        %v236 = vadd.f32 %v183, %v235
        %v237 = vpop.f32.mrb[0].mxu0
        %v238 = vpop.f32.mrb[0].mxu0
        %v239 = vpop.f32.mrb[0].mxu0
        %240 = vdwg.mxu0
        %vm241 = vcmask 130048
        %242 = vst.msk [vmem:[%s161] sm:$0xff] %vm241, %v236
        %s243 = sand.u32 %s93, 1
        %s244 = scalar_lea.sflag [#allocation3], %s243
        %s245 = sand.u32 %s93, 1
        %s246 = smul.addr %s245, 8
        %s247 = scalar_lea.vmem [#allocation2], %s246
        // Predicated region
        $region33: #{tpu_custom_call.1} parent=31 // pred_check
          %p248 = pneg %p103
        $region34: #{tpu_custom_call.1} parent=31 // pred_check_branch
          %250 = sbr.rel (%p248) target = $region36
        $region35: #{tpu_custom_call.1} parent=31 // pred_region
          %s252 = ssub.s32 128, 128
          %253 = vsyncadd %s244, %s252
          %s254 = smul.addr %s17, 128
          %s255 = scalar_lea.hbm %s3, %s254
          %s257 = sshll.u32 %s247, 4
          %s258 = int_to_ptr.vmem [resolvable:$true] %s257
          %260 = dma.vmem_to_hbm [thread:$0]  %s258, 128, %s255, %s244
        $region36: #{tpu_custom_call.1} parent=31 // pred_fallthru
          _
      $region32: #{tpu_custom_call.1} parent=5 // pred_fallthru
        _
      %p261 = scmp.le.s32.totalorder 2, %s12
      // Predicated region
      $region37: #{tpu_custom_call.1} parent=5 // pred_check
        %p262 = pneg %p261
      $region38: #{tpu_custom_call.1} parent=5 // pred_check_branch
        %264 = sbr.rel (%p262) target = $region40
      $region39: #{tpu_custom_call.1} parent=5 // pred_region
        %s265 = ssub.s32 %s12, 2
        // Predicated region
        $region41: #{tpu_custom_call.1} parent=39 // pred_check
          %p266 = pneg %p109
        $region42: #{tpu_custom_call.1} parent=39 // pred_check_branch
          %268 = sbr.rel (%p266) target = $region44
        $region43: #{tpu_custom_call.1} parent=39 // pred_region
          %s269 = sand.u32 %s94, 1
          %s270 = scalar_lea.sflag [#allocation3], %s269
          %s271 = sand.u32 %s94, 1
          %s272 = smul.addr %s271, 8
          %s273 = scalar_lea.vmem [#allocation2], %s272
          %274 = dma.done %s270, 128
        $region44: #{tpu_custom_call.1} parent=39 // pred_fallthru
          _
      $region40: #{tpu_custom_call.1} parent=5 // pred_fallthru
        _
    $region6: #{tpu_custom_call.1} parent=1 // loop_footer
      %s16 = sadd.s32 1, %s12
    $region7: #{tpu_custom_call.1} parent=1 // loop_footer_branch
      %11 = sbr.rel target = $region3
    $region8: #{tpu_custom_call.1} parent=1 // loop_exit
      _
    %275 = vsyncpa [#allocation3], 1
    %s276 = scalar_lea.sflag [#allocation3], 1
    %277 = vsyncpa %s276, 1

</llo_original>
